<compile_context>
chip_gen: v7x
topology: tpu7x:2x2x1
jax: 0.10.0
libtpu: 0.0.40
codegen_flags: <defaults>
</compile_context>

<pallas_src>
import jax
import jax.numpy as jnp
from jax.experimental import pallas as pl
from jax.experimental.pallas import tpu as pltpu


def qmix_kernel(x_ref, wcat_ref, v2w_ref, v2b_ref, out_ref):
    # Static sizes derived from the Ref shapes.
    S1 = wcat_ref.shape[1]          # state_dim + 1 (ones column for fused bias)
    E = v2w_ref.shape[0]            # mixing_embed_dim
    N = x_ref.shape[0] - S1         # n_agents
    NE = N * E

    x = x_ref[...]                  # (S+1+N, TB)  -- batch rows live on lanes
    st1 = x[:S1, :]                 # (S+1, TB)    states with appended ones row
    qs = x[S1:, :]                  # (N, TB)

    # One fused hypernet matmul (bias folded in via the ones row):
    #   rows [0, NE)        -> hyper_w_1(s)   (flat, agent-major k = n*E + e)
    #   rows [NE, NE+E)     -> hyper_b_1(s)
    #   rows [NE+E, NE+2E)  -> hyper_w_final(s)
    #   rows [NE+2E, NE+3E) -> V first-layer pre-activation
    r = jnp.dot(wcat_ref[...], st1, preferred_element_type=jnp.float32)  # (NE+3E, TB)

    w1 = jnp.abs(r[:NE, :])                              # |W1|       (N*E, TB)
    b1 = r[NE:NE + E, :]                                 # b1         (E, TB)
    wf = jnp.abs(r[NE + E:NE + 2 * E, :])                # |W_final|  (E, TB)
    vh = jnp.maximum(r[NE + 2 * E:NE + 3 * E, :], 0.0)   # relu(V h)  (E, TB)

    # bmm(agent_qs (B,1,N), W1 (B,N,E)) + b1  ==  sum_n q_n * |W1[n*E:(n+1)*E]|
    # N is small & static -> unrolled sublane-broadcast FMAs (no tiny MXU op).
    hidden = b1
    for n in range(N):
        hidden = hidden + qs[n:n + 1, :] * w1[n * E:(n + 1) * E, :]

    # ELU (alpha = 1.0); exp goes to the EUP slot.
    hidden = jnp.where(hidden > 0, hidden, jnp.exp(hidden) - 1.0)

    # Fold V layer 2 (E -> 1 matmul) into the same sublane reduction:
    #   y = sum_e(hidden * |wf|) + (sum_e(vh * v2w) + v2b)
    z = hidden * wf + vh * v2w_ref[...]                                 # (E, TB)
    out_ref[...] = jnp.sum(z, axis=0, keepdims=True) + v2b_ref[...]     # (1, TB)


def qmixer_forward(agent_qs, states, params, *, tb=256):
    """agent_qs: (bs, max_t, N), states: (bs, max_t, S) -> q_tot: (bs, max_t, 1)."""
    bs, max_t, N = agent_qs.shape
    S = states.shape[-1]
    B = bs * max_t

    (hw1w, hw1b, hb1w, hb1b, hwfw, hwfb, v1w, v1b, v2w, v2b) = params
    E = hb1w.shape[1]
    Wtot = N * E + 3 * E

    # ---- pack weights: one fused state matmul with the bias folded in as an
    #      extra input column (ones row on the activation side).
    wcat = jnp.concatenate([hw1w, hb1w, hwfw, v1w], axis=1)            # (S, Wtot)
    bcat = jnp.concatenate([hw1b, hb1b, hwfb, v1b], axis=1)            # (1, Wtot)
    wcat_t = jnp.concatenate([wcat, bcat], axis=0).T.astype(jnp.float32)  # (Wtot, S+1)
    v2w_c = v2w.astype(jnp.float32)                                    # (E, 1)
    v2b_c = v2b.astype(jnp.float32)                                    # (1, 1)

    # ---- activations: one (S+1+N, B_pad) stream, rows-on-lanes.
    # Shrink the tile for small B (still a multiple of 128), pad B up to it.
    tb = int(min(tb, max(128, pl.cdiv(B, 128) * 128)))
    B_pad = pl.cdiv(B, tb) * tb
    x = jnp.concatenate(
        [states.reshape(B, S).astype(jnp.float32),
         jnp.ones((B, 1), jnp.float32),
         agent_qs.reshape(B, N).astype(jnp.float32)], axis=1)          # (B, S+1+N)
    if B_pad != B:
        x = jnp.pad(x, ((0, B_pad - B), (0, 0)))
    x_t = x.T                                                          # (S+1+N, B_pad)

    grid = (B_pad // tb,)
    # TODO(synk): on v7x, for very large B consider capping tb so the parallel
    # grid has >=2 steps (megacore); irrelevant at this test size.

    out = pl.pallas_call(
        qmix_kernel,
        out_shape=jax.ShapeDtypeStruct((1, B_pad), jnp.float32),
        grid_spec=pltpu.PrefetchScalarGridSpec(
            num_scalar_prefetch=0,
            grid=grid,
            in_specs=[
                pl.BlockSpec((S + 1 + N, tb), lambda i: (0, i)),  # states|1|qs (transposed)
                pl.BlockSpec((Wtot, S + 1), lambda i: (0, 0)),    # fused hypernet W|b
                pl.BlockSpec((E, 1), lambda i: (0, 0)),           # V layer-2 weight
                pl.BlockSpec((1, 1), lambda i: (0, 0)),           # V layer-2 bias
            ],
            out_specs=pl.BlockSpec((1, tb), lambda i: (0, i)),     # lane-dense output
        ),
        compiler_params=pltpu.CompilerParams(dimension_semantics=("parallel",)),
    )(x_t, wcat_t, v2w_c, v2b_c)

    return out[0, :B].reshape(bs, max_t, 1)


def qmixer_reference(agent_qs, states, params):
    """Pure-JAX mirror of the PyTorch forward (for validation)."""
    (hw1w, hw1b, hb1w, hb1b, hwfw, hwfb, v1w, v1b, v2w, v2b) = params
    bs, max_t, N = agent_qs.shape
    S = states.shape[-1]
    E = hb1w.shape[1]
    B = bs * max_t
    st = states.reshape(B, S)
    qs = agent_qs.reshape(B, 1, N)
    w1 = jnp.abs(st @ hw1w + hw1b).reshape(B, N, E)
    b1 = (st @ hb1w + hb1b).reshape(B, 1, E)
    h = jnp.einsum('bon,bne->boe', qs, w1) + b1
    h = jnp.where(h > 0, h, jnp.exp(h) - 1.0)
    wf = jnp.abs(st @ hwfw + hwfb).reshape(B, E, 1)
    v = (jnp.maximum(st @ v1w + v1b, 0.0) @ v2w + v2b).reshape(B, 1, 1)
    y = jnp.einsum('boe,bei->boi', h, wf) + v
    return y.reshape(bs, max_t, 1)


def init_params(key, S, E, N):
    ks = jax.random.split(key, 10)
    scale = 0.1
    hw1w = scale * jax.random.normal(ks[0], (S, E * N), jnp.float32)
    hw1b = scale * jax.random.normal(ks[1], (1, E * N), jnp.float32)
    hb1w = scale * jax.random.normal(ks[2], (S, E), jnp.float32)
    hb1b = scale * jax.random.normal(ks[3], (1, E), jnp.float32)
    hwfw = scale * jax.random.normal(ks[4], (S, E), jnp.float32)
    hwfb = scale * jax.random.normal(ks[5], (1, E), jnp.float32)
    v1w = scale * jax.random.normal(ks[6], (S, E), jnp.float32)
    v1b = scale * jax.random.normal(ks[7], (1, E), jnp.float32)
    v2w = scale * jax.random.normal(ks[8], (E, 1), jnp.float32)
    v2b = scale * jax.random.normal(ks[9], (1, 1), jnp.float32)
    return (hw1w, hw1b, hb1w, hb1b, hwfw, hwfb, v1w, v1b, v2w, v2b)


if __name__ == "__main__":
    # Small config: bs=2, max_t=8, n_agents=4, state_dim=32, mixing_embed_dim=32.
    bs, max_t, N, S, E = 2, 8, 4, 32, 32
    key = jax.random.PRNGKey(0)
    k_q, k_s, k_p = jax.random.split(key, 3)

    agent_qs = jax.random.normal(k_q, (bs, max_t, N), jnp.float32)
    states = jax.random.normal(k_s, (bs, max_t, S), jnp.float32)
    params = init_params(k_p, S, E, N)

    q_tot = qmixer_forward(agent_qs, states, params)
    q_tot = jax.block_until_ready(q_tot)

    ref = qmixer_reference(agent_qs, states, params)
    assert q_tot.shape == (bs, max_t, 1)
    assert jnp.allclose(q_tot, ref, atol=1e-3, rtol=1e-3), float(jnp.max(jnp.abs(q_tot - ref)))

    # TODO(synk): imagine_groups / state_masks branch, softmax_mixing_weights and
    # the 2-layer hypernet variant are not exercised by this kernel.
    print("KERNEL_OK")
</pallas_src>

<mosaic_0001>
module attributes {stable_mosaic.version = 11 : i64} {
  func.func @qmix_kernel(%arg0: i32, %arg1: memref<37x128xf32, #tpu.memory_space<vmem>>, %arg2: memref<224x33xf32, #tpu.memory_space<vmem>>, %arg3: memref<32x1xf32, #tpu.memory_space<vmem>>, %arg4: memref<1x1xf32, #tpu.memory_space<vmem>>, %arg5: memref<1x128xf32, #tpu.memory_space<vmem>>) attributes {dimension_semantics = [#tpu.dimension_semantics<parallel>], iteration_bounds = array<i64: 1>, scalar_prefetch = 0 : i64, scratch_operands = 0 : i64, tpu.core_type = #tpu.core_type<tc>, window_params = [{transform_indices = @transform_0, window_bounds = array<i64: 37, 128>}, {pipeline_mode = #tpu.pipeline_mode<synchronous>, transform_indices = @transform_1, window_bounds = array<i64: 224, 33>}, {pipeline_mode = #tpu.pipeline_mode<synchronous>, transform_indices = @transform_2, window_bounds = array<i64: 32, 1>}, {pipeline_mode = #tpu.pipeline_mode<synchronous>, transform_indices = @transform_3, window_bounds = array<i64: 1, 1>}, {transform_indices = @transform_4, window_bounds = array<i64: 1, 128>}]} {
    %c0 = arith.constant 0 : index
    %c0_0 = arith.constant 0 : index
    %0 = vector.load %arg1[%c0, %c0_0] : memref<37x128xf32, #tpu.memory_space<vmem>>, vector<37x128xf32>
    %1 = vector.extract_strided_slice %0 {offsets = [0, 0], sizes = [33, 128], strides = [1, 1]} : vector<37x128xf32> to vector<33x128xf32>
    %2 = vector.extract_strided_slice %0 {offsets = [33, 0], sizes = [4, 128], strides = [1, 1]} : vector<37x128xf32> to vector<4x128xf32>
    %c0_1 = arith.constant 0 : index
    %c0_2 = arith.constant 0 : index
    %3 = vector.load %arg2[%c0_1, %c0_2] : memref<224x33xf32, #tpu.memory_space<vmem>>, vector<224x33xf32>
    %cst = arith.constant dense<0.000000e+00> : vector<224x128xf32>
    %4 = tpu.matmul %3, %1, %cst {dimension_numbers = #tpu.dot_dimension_numbers<[1], [0], [0], [1], [0, 0, 1, 1], [], []>} : vector<224x33xf32>, vector<33x128xf32>, vector<224x128xf32> -> vector<224x128xf32>
    %5 = vector.extract_strided_slice %4 {offsets = [0, 0], sizes = [128, 128], strides = [1, 1]} : vector<224x128xf32> to vector<128x128xf32>
    %6 = math.absf %5 : vector<128x128xf32>
    %7 = vector.extract_strided_slice %4 {offsets = [128, 0], sizes = [32, 128], strides = [1, 1]} : vector<224x128xf32> to vector<32x128xf32>
    %8 = vector.extract_strided_slice %4 {offsets = [160, 0], sizes = [32, 128], strides = [1, 1]} : vector<224x128xf32> to vector<32x128xf32>
    %9 = math.absf %8 : vector<32x128xf32>
    %10 = vector.extract_strided_slice %4 {offsets = [192, 0], sizes = [32, 128], strides = [1, 1]} : vector<224x128xf32> to vector<32x128xf32>
    %cst_3 = arith.constant 0.000000e+00 : f32
    %11 = vector.broadcast %cst_3 : f32 to vector<32x128xf32>
    %12 = arith.maximumf %10, %11 : vector<32x128xf32>
    %13 = vector.extract_strided_slice %2 {offsets = [0, 0], sizes = [1, 128], strides = [1, 1]} : vector<4x128xf32> to vector<1x128xf32>
    %14 = vector.extract_strided_slice %6 {offsets = [0, 0], sizes = [32, 128], strides = [1, 1]} : vector<128x128xf32> to vector<32x128xf32>
    %15 = vector.broadcast %13 : vector<1x128xf32> to vector<32x128xf32>
    %16 = arith.mulf %15, %14 : vector<32x128xf32>
    %17 = arith.addf %7, %16 : vector<32x128xf32>
    %18 = vector.extract_strided_slice %2 {offsets = [1, 0], sizes = [1, 128], strides = [1, 1]} : vector<4x128xf32> to vector<1x128xf32>
    %19 = vector.extract_strided_slice %6 {offsets = [32, 0], sizes = [32, 128], strides = [1, 1]} : vector<128x128xf32> to vector<32x128xf32>
    %20 = vector.broadcast %18 : vector<1x128xf32> to vector<32x128xf32>
    %21 = arith.mulf %20, %19 : vector<32x128xf32>
    %22 = arith.addf %17, %21 : vector<32x128xf32>
    %23 = vector.extract_strided_slice %2 {offsets = [2, 0], sizes = [1, 128], strides = [1, 1]} : vector<4x128xf32> to vector<1x128xf32>
    %24 = vector.extract_strided_slice %6 {offsets = [64, 0], sizes = [32, 128], strides = [1, 1]} : vector<128x128xf32> to vector<32x128xf32>
    %25 = vector.broadcast %23 : vector<1x128xf32> to vector<32x128xf32>
    %26 = arith.mulf %25, %24 : vector<32x128xf32>
    %27 = arith.addf %22, %26 : vector<32x128xf32>
    %28 = vector.extract_strided_slice %2 {offsets = [3, 0], sizes = [1, 128], strides = [1, 1]} : vector<4x128xf32> to vector<1x128xf32>
    %29 = vector.extract_strided_slice %6 {offsets = [96, 0], sizes = [32, 128], strides = [1, 1]} : vector<128x128xf32> to vector<32x128xf32>
    %30 = vector.broadcast %28 : vector<1x128xf32> to vector<32x128xf32>
    %31 = arith.mulf %30, %29 : vector<32x128xf32>
    %32 = arith.addf %27, %31 : vector<32x128xf32>
    %cst_4 = arith.constant 0.000000e+00 : f32
    %33 = vector.broadcast %cst_4 : f32 to vector<32x128xf32>
    %34 = arith.cmpf ogt, %32, %33 : vector<32x128xf32>
    %35 = math.exp %32 : vector<32x128xf32>
    %cst_5 = arith.constant 1.000000e+00 : f32
    %36 = vector.broadcast %cst_5 : f32 to vector<32x128xf32>
    %37 = arith.subf %35, %36 : vector<32x128xf32>
    %38 = arith.select %34, %32, %37 : vector<32x128xi1>, vector<32x128xf32>
    %39 = arith.mulf %38, %9 : vector<32x128xf32>
    %c0_6 = arith.constant 0 : index
    %c0_7 = arith.constant 0 : index
    %40 = vector.load %arg3[%c0_6, %c0_7] : memref<32x1xf32, #tpu.memory_space<vmem>>, vector<32x1xf32>
    %41 = vector.broadcast %40 : vector<32x1xf32> to vector<32x128xf32>
    %42 = arith.mulf %12, %41 : vector<32x128xf32>
    %43 = arith.addf %39, %42 : vector<32x128xf32>
    %cst_8 = arith.constant dense<0.000000e+00> : vector<128xf32>
    %44 = vector.multi_reduction <add>, %43, %cst_8 [0] : vector<32x128xf32> to vector<128xf32>
    %45 = vector.shape_cast %44 : vector<128xf32> to vector<1x128xf32>
    %c0_9 = arith.constant 0 : index
    %c0_10 = arith.constant 0 : index
    %46 = vector.load %arg4[%c0_9, %c0_10] : memref<1x1xf32, #tpu.memory_space<vmem>>, vector<1x1xf32>
    %47 = vector.broadcast %46 : vector<1x1xf32> to vector<1x128xf32>
    %48 = arith.addf %45, %47 : vector<1x128xf32>
    %c0_11 = arith.constant 0 : index
    %c0_12 = arith.constant 0 : index
    %49 = vector.load %arg5[%c0_11, %c0_12] : memref<1x128xf32, #tpu.memory_space<vmem>>, vector<1x128xf32>
    tpu.vector_store %arg5[%c0_11, %c0_12], %48 {strides = array<i32>} : memref<1x128xf32, #tpu.memory_space<vmem>>, vector<1x128xf32>,
    return
  }
  func.func @transform_0(%arg0: i32) -> (i32, i32) {
    %c0_i32 = arith.constant 0 : i32
    %c0_i32_0 = arith.constant 0 : i32
    return %c0_i32, %arg0 : i32, i32
  }
  func.func @transform_1(%arg0: i32) -> (i32, i32) {
    %c0_i32 = arith.constant 0 : i32
    %c0_i32_0 = arith.constant 0 : i32
    %c0_i32_1 = arith.constant 0 : i32
    return %c0_i32, %c0_i32_0 : i32, i32
  }
  func.func @transform_2(%arg0: i32) -> (i32, i32) {
    %c0_i32 = arith.constant 0 : i32
    %c0_i32_0 = arith.constant 0 : i32
    %c0_i32_1 = arith.constant 0 : i32
    return %c0_i32, %c0_i32_0 : i32, i32
  }
  func.func @transform_3(%arg0: i32) -> (i32, i32) {
    %c0_i32 = arith.constant 0 : i32
    %c0_i32_0 = arith.constant 0 : i32
    %c0_i32_1 = arith.constant 0 : i32
    return %c0_i32, %c0_i32_0 : i32, i32
  }
  func.func @transform_4(%arg0: i32) -> (i32, i32) {
    %c0_i32 = arith.constant 0 : i32
    %c0_i32_0 = arith.constant 0 : i32
    return %c0_i32, %arg0 : i32, i32
  }
}

</mosaic_0001>

<llo_original>
// kernel: tpu_custom_call.1
$region0: #{tpu_custom_call.1}
  #allocation0 [shape = 'u32[]', space=smem, size = 0x4, offset = 0x4, fixed_abs, tag = 'smem constant byte address 0x4 - core index']
  #allocation1 [shape = 'u32[144,128]{1,0:T(1,128)}', space=vmem, size = 0x12000, scoped, tag = 'internal scratch']
  #allocation2 [shape = 'f32[1,1]{1,0:T(1,128)S(1)}', space=vmem, size = 0x200, scoped, tag = 'scoped memory for tpu_custom_call.1']
  %s0 = inlined_call_operand.vmem [shape: f32[37,128], index: 0, kind: input, shape index: {}]
  %s1 = inlined_call_operand.vmem [shape: f32[224,33], index: 1, kind: input, shape index: {}]
  %s2 = inlined_call_operand.vmem [shape: f32[32,1], index: 2, kind: input, shape index: {}]
  %s3 = inlined_call_operand.<no memory space> [shape: f32[1,1], index: 3, kind: input, shape index: {}]
  %s4 = inlined_call_operand.hbm [shape: f32[1,128], index: 4, kind: output, shape index: {}]
  %s5 = sld [smem:[#allocation0]]
  $region26: #{tpu_custom_call.1} parent=0
    _
  %s7 = ssub.s32 1, %s5
  %s8 = scalar_select 0, %s7, %s5
  %v9 = vstv %s3
  %10 = vst [vmem:[#allocation2] sm:$0x1] %v9
  $region1: #{tpu_custom_call.1} parent=0
    #allocation3 [shape = 'u8[512]{0}', space=vmem, size = 0x400, scoped, tag = 'output window, operand 0, single buffered']
    #allocation4 [shape = 's32[1]{0}', space=sflag, size = 0x4, scoped, tag = 'scoped memory for tpu_custom_call.1']
    %11 = vsyncpa [#allocation4], 0
    // Predicated region
    $region2: #{tpu_custom_call.1} parent=1 // pred_check
      _
    $region3: #{tpu_custom_call.1} parent=1 // pred_check_branch
      %13 = sbr.rel (0) target = $region5
    $region4: #{tpu_custom_call.1} parent=1 // pred_region
      _
    $region5: #{tpu_custom_call.1} parent=1 // pred_fallthru
      _
    // Predicated region
    $region6: #{tpu_custom_call.1} parent=1 // pred_check
      _
    $region7: #{tpu_custom_call.1} parent=1 // pred_check_branch
      %15 = sbr.rel (0) target = $region9
    $region8: #{tpu_custom_call.1} parent=1 // pred_region
      _
    $region9: #{tpu_custom_call.1} parent=1 // pred_fallthru
      _
    // Predicated region
    $region10: #{tpu_custom_call.1} parent=1 // pred_check
      _
    $region11: #{tpu_custom_call.1} parent=1 // pred_check_branch
      %17 = sbr.rel (0) target = $region13
    $region12: #{tpu_custom_call.1} parent=1 // pred_region
      _
    $region13: #{tpu_custom_call.1} parent=1 // pred_fallthru
      _
    // Predicated region
    $region14: #{tpu_custom_call.1} parent=1 // pred_check
      _
    $region15: #{tpu_custom_call.1} parent=1 // pred_check_branch
      %19 = sbr.rel (0) target = $region17
    $region16: #{tpu_custom_call.1} parent=1 // pred_region
      _
    $region17: #{tpu_custom_call.1} parent=1 // pred_fallthru
      _
    %v20 = vld [vmem:[%s0] sm:$0xff]
    %v21 = vld [vmem:[%s0 + $0x8] sm:$0xff]
    %v22 = vld [vmem:[%s0 + $0x10] sm:$0xff]
    %v23 = vld [vmem:[%s0 + $0x18] sm:$0xff]
    %v24 = vld [vmem:[%s0 + $0x20] sm:$0x1f]
    %v25 = vld [vmem:[%s1] sm:$0xff]
    %v26 = vld [vmem:[%s1 + $0x8] sm:$0xff]
    %v27 = vld [vmem:[%s1 + $0x10] sm:$0xff]
    %v28 = vld [vmem:[%s1 + $0x18] sm:$0xff]
    %v29 = vld [vmem:[%s1 + $0x20] sm:$0xff]
    %v30 = vld [vmem:[%s1 + $0x28] sm:$0xff]
    %v31 = vld [vmem:[%s1 + $0x30] sm:$0xff]
    %v32 = vld [vmem:[%s1 + $0x38] sm:$0xff]
    %v33 = vld [vmem:[%s1 + $0x40] sm:$0xff]
    %v34 = vld [vmem:[%s1 + $0x48] sm:$0xff]
    %v35 = vld [vmem:[%s1 + $0x50] sm:$0xff]
    %v36 = vld [vmem:[%s1 + $0x58] sm:$0xff]
    %v37 = vld [vmem:[%s1 + $0x60] sm:$0xff]
    %v38 = vld [vmem:[%s1 + $0x68] sm:$0xff]
    %v39 = vld [vmem:[%s1 + $0x70] sm:$0xff]
    %v40 = vld [vmem:[%s1 + $0x78] sm:$0xff]
    %v41 = vld [vmem:[%s1 + $0x80] sm:$0xff]
    %v42 = vld [vmem:[%s1 + $0x88] sm:$0xff]
    %v43 = vld [vmem:[%s1 + $0x90] sm:$0xff]
    %v44 = vld [vmem:[%s1 + $0x98] sm:$0xff]
    %v45 = vld [vmem:[%s1 + $0xa0] sm:$0xff]
    %v46 = vld [vmem:[%s1 + $0xa8] sm:$0xff]
    %v47 = vld [vmem:[%s1 + $0xb0] sm:$0xff]
    %v48 = vld [vmem:[%s1 + $0xb8] sm:$0xff]
    %v49 = vld [vmem:[%s1 + $0xc0] sm:$0xff]
    %v50 = vld [vmem:[%s1 + $0xc8] sm:$0xff]
    %v51 = vld [vmem:[%s1 + $0xd0] sm:$0xff]
    %v52 = vld [vmem:[%s1 + $0xd8] sm:$0xff]
    %vm53 = vcmask 269312
    %v55 = vsel %vm53, %v25, 0
    %v58 = vsel %vm53, %v26, 0
    %v61 = vsel %vm53, %v27, 0
    %v64 = vsel %vm53, %v28, 0
    %v67 = vsel %vm53, %v29, 0
    %v70 = vsel %vm53, %v30, 0
    %v73 = vsel %vm53, %v31, 0
    %v76 = vsel %vm53, %v32, 0
    %v79 = vsel %vm53, %v33, 0
    %v82 = vsel %vm53, %v34, 0
    %v85 = vsel %vm53, %v35, 0
    %v88 = vsel %vm53, %v36, 0
    %v91 = vsel %vm53, %v37, 0
    %v94 = vsel %vm53, %v38, 0
    %v97 = vsel %vm53, %v39, 0
    %v100 = vsel %vm53, %v40, 0
    %v103 = vsel %vm53, %v41, 0
    %v106 = vsel %vm53, %v42, 0
    %v109 = vsel %vm53, %v43, 0
    %v112 = vsel %vm53, %v44, 0
    %v115 = vsel %vm53, %v45, 0
    %v118 = vsel %vm53, %v46, 0
    %v121 = vsel %vm53, %v47, 0
    %v124 = vsel %vm53, %v48, 0
    %v127 = vsel %vm53, %v49, 0
    %v130 = vsel %vm53, %v50, 0
    %v133 = vsel %vm53, %v51, 0
    %v136 = vsel %vm53, %v52, 0
    %vm138 = vcmask 1040384
    %v140 = vsel %vm138, %v24, 0
    %142 = vmatprep.subr.mxu0 0.0
    %143 = vmatpush1.msra.mxu0 %v20
    %144 = vmatprep.subr.mxu0 0.0
    %145 = vmatpush1.msra.mxu0 %v21
    %146 = vmatprep.subr.mxu0 0.0
    %147 = vmatpush1.msra.mxu0 %v22
    %148 = vmatprep.subr.mxu0 0.0
    %149 = vmatpush1.msra.mxu0 %v23
    %150 = vmatprep.subr.mxu0 0.0
    %151 = vmatpush1.msra.mxu0 %v140
    %152 = vmatprep.subr.mxu0 0.0
    %153 = vmatpush1.msra.mxu0 0.0
    %154 = vmatprep.subr.mxu0 0.0
    %155 = vmatpush1.msra.mxu0 0.0
    %156 = vmatprep.subr.mxu0 0.0
    %157 = vmatpush1.msra.mxu0 0.0
    %158 = vmatprep.subr.mxu0 0.0
    %159 = vmatpush1.msra.mxu0 0.0
    %160 = vmatprep.subr.mxu0 0.0
    %161 = vmatpush1.msra.mxu0 0.0
    %162 = vmatprep.subr.mxu0 0.0
    %163 = vmatpush1.msra.mxu0 0.0
    %164 = vmatprep.subr.mxu0 0.0
    %165 = vmatpush1.msra.mxu0 0.0
    %166 = vmatprep.subr.mxu0 0.0
    %167 = vmatpush1.msra.mxu0 0.0
    %168 = vmatprep.subr.mxu0 0.0
    %169 = vmatpush1.msra.mxu0 0.0
    %170 = vmatprep.subr.mxu0 0.0
    %171 = vmatpush1.msra.mxu0 0.0
    %172 = vmatprep.subr.mxu0 0.0
    %173 = vmatpush1.msra.mxu0 0.0
    %174 = vmatprep.subr.mxu0 0.0
    %175 = vmatpush1.msra.mxu0 0.0
    %176 = vmatprep.subr.mxu0 0.0
    %177 = vmatpush1.msra.mxu0 0.0
    %178 = vmatprep.subr.mxu0 0.0
    %179 = vmatpush1.msra.mxu0 0.0
    %180 = vmatprep.subr.mxu0 0.0
    %181 = vmatpush1.msra.mxu0 0.0
    %182 = vmatprep.subr.mxu0 0.0
    %183 = vmatpush1.msra.mxu0 0.0
    %184 = vmatprep.subr.mxu0 0.0
    %185 = vmatpush1.msra.mxu0 0.0
    %186 = vmatprep.subr.mxu0 0.0
    %187 = vmatpush1.msra.mxu0 0.0
    %188 = vmatprep.subr.mxu0 0.0
    %189 = vmatpush1.msra.mxu0 0.0
    %190 = vmatprep.subr.mxu0 0.0
    %191 = vmatpush1.msra.mxu0 0.0
    %192 = vmatprep.subr.mxu0 0.0
    %193 = vmatpush1.msra.mxu0 0.0
    %194 = vmatprep.subr.mxu0 0.0
    %195 = vmatpush1.msra.mxu0 0.0
    %196 = vmatprep.subr.mxu0 0.0
    %197 = vmatpush1.msra.mxu0 0.0
    %198 = vmatprep.subr.mxu0 0.0
    %199 = vmatpush1.msra.mxu0 0.0
    %200 = vmatprep.subr.mxu0 0.0
    %201 = vmatpush1.msra.mxu0 0.0
    %202 = vmatprep.subr.mxu0 0.0
    %203 = vmatpush1.msra.mxu0 0.0
    %204 = vmatprep.subr.mxu0 0.0
    %205 = vmatpush1.msra.mxu0 0.0
    %206 = vmatprep.mubr.f32.mxu0 0.0
    %207 = vmatmul.mubr.f32.gmra.mrb[0].mxu0 %v55
    %v208 = vpop.f32.mrb[0].mxu0
    %v209 = vadd.f32 0.0, %v208
    %v210 = vpop.f32.mrb[0].mxu0
    %211 = vmatprep.mubr.f32.mxu0 0.0
    %212 = vmatmul.mubr.f32.gmra.mrb[0].mxu0 %v58
    %v213 = vpop.f32.mrb[0].mxu0
    %v214 = vadd.f32 0.0, %v213
    %v215 = vpop.f32.mrb[0].mxu0
    %216 = vmatprep.mubr.f32.mxu0 0.0
    %217 = vmatmul.mubr.f32.gmra.mrb[0].mxu0 %v61
    %v218 = vpop.f32.mrb[0].mxu0
    %v219 = vadd.f32 0.0, %v218
    %v220 = vpop.f32.mrb[0].mxu0
    %221 = vmatprep.mubr.f32.mxu0 0.0
    %222 = vmatmul.mubr.f32.gmra.mrb[0].mxu0 %v64
    %v223 = vpop.f32.mrb[0].mxu0
    %v224 = vadd.f32 0.0, %v223
    %v225 = vpop.f32.mrb[0].mxu0
    %226 = vmatprep.mubr.f32.mxu0 0.0
    %227 = vmatmul.mubr.f32.gmra.mrb[0].mxu0 %v67
    %v228 = vpop.f32.mrb[0].mxu0
    %v229 = vadd.f32 0.0, %v228
    %v230 = vpop.f32.mrb[0].mxu0
    %231 = vmatprep.mubr.f32.mxu0 0.0
    %232 = vmatmul.mubr.f32.gmra.mrb[0].mxu0 %v70
    %v233 = vpop.f32.mrb[0].mxu0
    %v234 = vadd.f32 0.0, %v233
    %v235 = vpop.f32.mrb[0].mxu0
    %236 = vmatprep.mubr.f32.mxu0 0.0
    %237 = vmatmul.mubr.f32.gmra.mrb[0].mxu0 %v73
    %v238 = vpop.f32.mrb[0].mxu0
    %v239 = vadd.f32 0.0, %v238
    %v240 = vpop.f32.mrb[0].mxu0
    %241 = vmatprep.mubr.f32.mxu0 0.0
    %242 = vmatmul.mubr.f32.gmra.mrb[0].mxu0 %v76
    %v243 = vpop.f32.mrb[0].mxu0
    %v244 = vadd.f32 0.0, %v243
    %v245 = vpop.f32.mrb[0].mxu0
    %246 = vmatprep.mubr.f32.mxu0 0.0
    %247 = vmatmul.mubr.f32.gmra.mrb[0].mxu0 %v79
    %v248 = vpop.f32.mrb[0].mxu0
    %v249 = vadd.f32 0.0, %v248
    %v250 = vpop.f32.mrb[0].mxu0
    %251 = vmatprep.mubr.f32.mxu0 0.0
    %252 = vmatmul.mubr.f32.gmra.mrb[0].mxu0 %v82
    %v253 = vpop.f32.mrb[0].mxu0
    %v254 = vadd.f32 0.0, %v253
    %v255 = vpop.f32.mrb[0].mxu0
    %256 = vmatprep.mubr.f32.mxu0 0.0
    %257 = vmatmul.mubr.f32.gmra.mrb[0].mxu0 %v85
    %v258 = vpop.f32.mrb[0].mxu0
    %v259 = vadd.f32 0.0, %v258
    %v260 = vpop.f32.mrb[0].mxu0
    %261 = vmatprep.mubr.f32.mxu0 0.0
    %262 = vmatmul.mubr.f32.gmra.mrb[0].mxu0 %v88
    %v263 = vpop.f32.mrb[0].mxu0
    %v264 = vadd.f32 0.0, %v263
    %v265 = vpop.f32.mrb[0].mxu0
    %266 = vmatprep.mubr.f32.mxu0 0.0
    %267 = vmatmul.mubr.f32.gmra.mrb[0].mxu0 %v91
    %v268 = vpop.f32.mrb[0].mxu0
    %v269 = vadd.f32 0.0, %v268
    %v270 = vpop.f32.mrb[0].mxu0
    %271 = vmatprep.mubr.f32.mxu0 0.0
    %272 = vmatmul.mubr.f32.gmra.mrb[0].mxu0 %v94
    %v273 = vpop.f32.mrb[0].mxu0
    %v274 = vadd.f32 0.0, %v273
    %v275 = vpop.f32.mrb[0].mxu0
    %276 = vmatprep.mubr.f32.mxu0 0.0
    %277 = vmatmul.mubr.f32.gmra.mrb[0].mxu0 %v97
    %v278 = vpop.f32.mrb[0].mxu0
    %v279 = vadd.f32 0.0, %v278
    %v280 = vpop.f32.mrb[0].mxu0
    %281 = vmatprep.mubr.f32.mxu0 0.0
    %282 = vmatmul.mubr.f32.gmra.mrb[0].mxu0 %v100
    %v283 = vpop.f32.mrb[0].mxu0
    %v284 = vadd.f32 0.0, %v283
    %v285 = vpop.f32.mrb[0].mxu0
    %286 = vmatprep.mubr.f32.mxu0 0.0
    %287 = vmatmul.mubr.f32.gmra.mrb[0].mxu0 %v103
    %v288 = vpop.f32.mrb[0].mxu0
    %v289 = vadd.f32 0.0, %v288
    %v290 = vpop.f32.mrb[0].mxu0
    %291 = vmatprep.mubr.f32.mxu0 0.0
    %292 = vmatmul.mubr.f32.gmra.mrb[0].mxu0 %v106
    %v293 = vpop.f32.mrb[0].mxu0
    %v294 = vadd.f32 0.0, %v293
    %v295 = vpop.f32.mrb[0].mxu0
    %296 = vmatprep.mubr.f32.mxu0 0.0
    %297 = vmatmul.mubr.f32.gmra.mrb[0].mxu0 %v109
    %v298 = vpop.f32.mrb[0].mxu0
    %v299 = vadd.f32 0.0, %v298
    %v300 = vpop.f32.mrb[0].mxu0
    %301 = vmatprep.mubr.f32.mxu0 0.0
    %302 = vmatmul.mubr.f32.gmra.mrb[0].mxu0 %v112
    %v303 = vpop.f32.mrb[0].mxu0
    %v304 = vadd.f32 0.0, %v303
    %v305 = vpop.f32.mrb[0].mxu0
    %306 = vmatprep.mubr.f32.mxu0 0.0
    %307 = vmatmul.mubr.f32.gmra.mrb[0].mxu0 %v115
    %v308 = vpop.f32.mrb[0].mxu0
    %v309 = vadd.f32 0.0, %v308
    %v310 = vpop.f32.mrb[0].mxu0
    %311 = vmatprep.mubr.f32.mxu0 0.0
    %312 = vmatmul.mubr.f32.gmra.mrb[0].mxu0 %v118
    %v313 = vpop.f32.mrb[0].mxu0
    %v314 = vadd.f32 0.0, %v313
    %v315 = vpop.f32.mrb[0].mxu0
    %316 = vmatprep.mubr.f32.mxu0 0.0
    %317 = vmatmul.mubr.f32.gmra.mrb[0].mxu0 %v121
    %v318 = vpop.f32.mrb[0].mxu0
    %v319 = vadd.f32 0.0, %v318
    %v320 = vpop.f32.mrb[0].mxu0
    %321 = vmatprep.mubr.f32.mxu0 0.0
    %322 = vmatmul.mubr.f32.gmra.mrb[0].mxu0 %v124
    %v323 = vpop.f32.mrb[0].mxu0
    %v324 = vadd.f32 0.0, %v323
    %v325 = vpop.f32.mrb[0].mxu0
    %326 = vmatprep.mubr.f32.mxu0 0.0
    %327 = vmatmul.mubr.f32.gmra.mrb[0].mxu0 %v127
    %v328 = vpop.f32.mrb[0].mxu0
    %v329 = vadd.f32 0.0, %v328
    %v330 = vpop.f32.mrb[0].mxu0
    %331 = vmatprep.mubr.f32.mxu0 0.0
    %332 = vmatmul.mubr.f32.gmra.mrb[0].mxu0 %v130
    %v333 = vpop.f32.mrb[0].mxu0
    %v334 = vadd.f32 0.0, %v333
    %v335 = vpop.f32.mrb[0].mxu0
    %336 = vmatprep.mubr.f32.mxu0 0.0
    %337 = vmatmul.mubr.f32.gmra.mrb[0].mxu0 %v133
    %v338 = vpop.f32.mrb[0].mxu0
    %v339 = vadd.f32 0.0, %v338
    %v340 = vpop.f32.mrb[0].mxu0
    %341 = vmatprep.mubr.f32.mxu0 0.0
    %342 = vmatmul.mubr.f32.gmra.mrb[0].mxu0 %v136
    %v343 = vpop.f32.mrb[0].mxu0
    %v344 = vadd.f32 0.0, %v343
    %v345 = vpop.f32.mrb[0].mxu0
    %346 = vdwg.mxu0
    %v347 = vand.u32 2147483647, %v209
    %v348 = vand.u32 2147483647, %v214
    %v349 = vand.u32 2147483647, %v219
    %v350 = vand.u32 2147483647, %v224
    %v351 = vand.u32 2147483647, %v229
    %v352 = vand.u32 2147483647, %v234
    %v353 = vand.u32 2147483647, %v239
    %v354 = vand.u32 2147483647, %v244
    %v355 = vand.u32 2147483647, %v249
    %v356 = vand.u32 2147483647, %v254
    %v357 = vand.u32 2147483647, %v259
    %v358 = vand.u32 2147483647, %v264
    %v359 = vand.u32 2147483647, %v269
    %v360 = vand.u32 2147483647, %v274
    %v361 = vand.u32 2147483647, %v279
    %v362 = vand.u32 2147483647, %v284
    %v363 = vand.u32 2147483647, %v309
    %v364 = vand.u32 2147483647, %v314
    %v365 = vand.u32 2147483647, %v319
    %v366 = vand.u32 2147483647, %v324
    %v367 = vmax.f32 %v329, 0.0
    %v368 = vmax.f32 %v334, 0.0
    %v369 = vmax.f32 %v339, 0.0
    %v370 = vmax.f32 %v344, 0.0
    %v371 = vlaneseq
    %v372 = vshrl.u32 %v371, 7
    %v373 = vsub.s32 1, %v372
    %v374 = vrot.slane %v24, %v373
    %v375 = vmul.f32 %v374, %v347
    %v376 = vmul.f32 %v374, %v348
    %v377 = vmul.f32 %v374, %v349
    %v378 = vmul.f32 %v374, %v350
    %v379 = vadd.f32 %v289, %v375
    %v380 = vadd.f32 %v294, %v376
    %v381 = vadd.f32 %v299, %v377
    %v382 = vadd.f32 %v304, %v378
    %v383 = vlaneseq
    %v384 = vshrl.u32 %v383, 7
    %v385 = vsub.s32 2, %v384
    %v386 = vrot.slane %v24, %v385
    %v387 = vmul.f32 %v386, %v351
    %v388 = vmul.f32 %v386, %v352
    %v389 = vmul.f32 %v386, %v353
    %v390 = vmul.f32 %v386, %v354
    %v391 = vadd.f32 %v379, %v387
    %v392 = vadd.f32 %v380, %v388
    %v393 = vadd.f32 %v381, %v389
    %v394 = vadd.f32 %v382, %v390
    %v395 = vlaneseq
    %v396 = vshrl.u32 %v395, 7
    %v397 = vsub.s32 3, %v396
    %v398 = vrot.slane %v24, %v397
    %v399 = vmul.f32 %v398, %v355
    %v400 = vmul.f32 %v398, %v356
    %v401 = vmul.f32 %v398, %v357
    %v402 = vmul.f32 %v398, %v358
    %v403 = vadd.f32 %v391, %v399
    %v404 = vadd.f32 %v392, %v400
    %v405 = vadd.f32 %v393, %v401
    %v406 = vadd.f32 %v394, %v402
    %v407 = vlaneseq
    %v408 = vshrl.u32 %v407, 7
    %v409 = vsub.s32 4, %v408
    %v410 = vrot.slane %v24, %v409
    %v411 = vmul.f32 %v410, %v359
    %v412 = vmul.f32 %v410, %v360
    %v413 = vmul.f32 %v410, %v361
    %v414 = vmul.f32 %v410, %v362
    %v415 = vadd.f32 %v403, %v411
    %v416 = vadd.f32 %v404, %v412
    %v417 = vadd.f32 %v405, %v413
    %v418 = vadd.f32 %v406, %v414
    %vm419 = vcmp.gt.f32.partialorder %v415, 0.0
    %vm420 = vcmp.gt.f32.partialorder %v416, 0.0
    %vm421 = vcmp.gt.f32.partialorder %v417, 0.0
    %vm422 = vcmp.gt.f32.partialorder %v418, 0.0
    %v423 = vmul.f32 %v415, 1.442695
    %v424 = vpow.pop %v423
    %v425 = vmul.f32 %v416, 1.442695
    %v426 = vpow.pop %v425
    %v427 = vmul.f32 %v417, 1.442695
    %v428 = vpow.pop %v427
    %v429 = vmul.f32 %v418, 1.442695
    %v430 = vpow.pop %v429
    %v431 = vsub.f32 %v424, 1.0
    %v432 = vsub.f32 %v426, 1.0
    %v433 = vsub.f32 %v428, 1.0
    %v434 = vsub.f32 %v430, 1.0
    %v435 = vsel %vm419, %v415, %v431
    %v436 = vsel %vm420, %v416, %v432
    %v437 = vsel %vm421, %v417, %v433
    %v438 = vsel %vm422, %v418, %v434
    %v439 = vmul.f32 %v435, %v363
    %v440 = vmul.f32 %v436, %v364
    %v441 = vmul.f32 %v437, %v365
    %v442 = vmul.f32 %v438, %v366
    %v443 = vld [vmem:[%s2] sm:$0xff]
    %v444 = vld [vmem:[%s2 + $0x8] sm:$0xff]
    %v445 = vld [vmem:[%s2 + $0x10] sm:$0xff]
    %v446 = vld [vmem:[%s2 + $0x18] sm:$0xff]
    %448 = vset.pattern.permute.xlu0 0
    %449 = vperm.xlu0 %448, %v443
    %v450 = vpop.permute.xlu0 %449
    %453 = vset.pattern.permute.xlu0 0
    %454 = vperm.xlu0 %453, %v444
    %v455 = vpop.permute.xlu0 %454
    %458 = vset.pattern.permute.xlu0 0
    %459 = vperm.xlu0 %458, %v445
    %v460 = vpop.permute.xlu0 %459
    %463 = vset.pattern.permute.xlu0 0
    %464 = vperm.xlu0 %463, %v446
    %v465 = vpop.permute.xlu0 %464
    %v467 = vmul.f32 %v367, %v450
    %v468 = vmul.f32 %v368, %v455
    %v469 = vmul.f32 %v369, %v460
    %v470 = vmul.f32 %v370, %v465
    %v471 = vadd.f32 %v439, %v467
    %v472 = vadd.f32 %v440, %v468
    %v473 = vadd.f32 %v441, %v469
    %v474 = vadd.f32 %v442, %v470
    %v475 = vadd.f32 %v471, %v472
    %v476 = vadd.f32 %v475, %v473
    %v477 = vadd.f32 %v476, %v474
    %v478 = vrot.slane %v477, 4
    %v479 = vadd.f32 %v477, %v478
    %v480 = vrot.slane %v479, 2
    %v481 = vadd.f32 %v479, %v480
    %v482 = vrot.slane %v481, 1
    %v483 = vadd.f32 %v481, %v482
    %v484 = vld [vmem:[#allocation2] sm:$0x1]
    %486 = vset.pattern.permute.xlu0 0
    %487 = vperm.xlu0 %486, %v484
    %v488 = vpop.permute.xlu0 %487
    %v490 = vlaneseq
    %v491 = vshrl.u32 %v490, 7
    %v492 = vsub.s32 0, %v491
    %v493 = vrot.slane %v488, %v492
    %v494 = vadd.f32 %v483, %v493
    %495 = vst [vmem:[#allocation3] sm:$0x1] %v494
    // Predicated region
    $region18: #{tpu_custom_call.1} parent=1 // pred_check
      _
    $region19: #{tpu_custom_call.1} parent=1 // pred_check_branch
      %497 = sbr.rel (0) target = $region21
    $region20: #{tpu_custom_call.1} parent=1 // pred_region
      %s499 = ssub.s32 16, 16
      %500 = vsyncadd [#allocation4], %s499
      %s502 = sshll.u32 [#allocation3], 4
      %s503 = int_to_ptr.vmem [resolvable:$true] %s502
      %505 = dma.vmem_to_hbm [thread:$0]  %s503, 16, %s4, [#allocation4]
    $region21: #{tpu_custom_call.1} parent=1 // pred_fallthru
      _
    // Predicated region
    $region22: #{tpu_custom_call.1} parent=1 // pred_check
      _
    $region23: #{tpu_custom_call.1} parent=1 // pred_check_branch
      %507 = sbr.rel (0) target = $region25
    $region24: #{tpu_custom_call.1} parent=1 // pred_region
      %508 = dma.done [#allocation4], 16
    $region25: #{tpu_custom_call.1} parent=1 // pred_fallthru
      _
    %509 = vsyncpa [#allocation4], 1

</llo_original>
